<compile_context>
chip_gen: v7x
topology: tpu7x:2x2x1
jax: 0.10.0
libtpu: 0.0.40
codegen_flags: <defaults>
</compile_context>

<pallas_src>
import jax
import jax.numpy as jnp
from jax.experimental import pallas as pl
from jax.experimental.pallas import tpu as pltpu

LANE = 128
# Round block rows to 32 so bf16 (16,128) and int8/fp8 (32,128) packed tiles
# stay native (free for f32: blocks are thousands of rows anyway).
ROW_ALIGN = 32
# Anything <= this goes through a single full-extent block (no grid, no
# per-step pipeline overhead). 2 x 8 MiB (in + out, no double-buffering on the
# gridless path) fits every generation once vmem_limit_bytes is set.
SINGLE_BLOCK_BYTES = 8 * 1024 * 1024
SINGLE_BLOCK_VMEM_LIMIT = 32 * 1024 * 1024
# v7x has 2 TensorCores; make sure the grid path has enough steps that both
# cores get >= 4 steps each and reach pipeline steady state.
MIN_GRID_BLOCKS = 8


def _tuning():
    """Pick (block_bytes, vmem_limit_bytes) from the chip's VMEM capacity."""
    try:
        vmem_cap = int(pltpu.get_tpu_info().vmem_capacity_bytes)
    except Exception:
        vmem_cap = 64 * 1024 * 1024  # conservative (v7x-sized) fallback
    if vmem_cap >= 96 * 1024 * 1024:
        # v5e / v6e: 128 MiB physical VMEM, ~0.8-1.4 TB/s HBM. 4 MiB blocks
        # cut the ~0.35 us/step pipeline overhead to a few percent while
        # 4 x 4 MiB double-buffered in+out stays well inside 32 MiB.
        return 4 * 1024 * 1024, 32 * 1024 * 1024
    # v7x: 64 MiB VMEM but ~3.2 TB/s HBM -> 8 MiB blocks, otherwise the fixed
    # per-step overhead is ~20%+ of wall time. 4 x 8 MiB = 32 MiB double-
    # buffered in+out, comfortably under a 48 MiB limit / 64 MiB physical.
    return 8 * 1024 * 1024, 48 * 1024 * 1024


def relu_kernel(x_ref, o_ref):
    # Elementwise ReLU on the whole VMEM tile (single VPU vmax per vreg).
    o_ref[...] = jnp.maximum(x_ref[...], jnp.zeros((), x_ref.dtype))


def _relu_single_block(x2d, dtype):
    """One full-extent block: exempt from the (8,128) rule, zero grid steps."""
    return pl.pallas_call(
        relu_kernel,
        out_shape=jax.ShapeDtypeStruct(x2d.shape, dtype),
        compiler_params=pltpu.CompilerParams(
            vmem_limit_bytes=SINGLE_BLOCK_VMEM_LIMIT,
        ),
    )(x2d)


def _relu_grid(x2d, dtype, itemsize):
    """Lane-aligned (rows, 128) slab streamed through a 1-D parallel grid."""
    rows = x2d.shape[0]
    block_bytes, vmem_limit = _tuning()

    block_rows = block_bytes // (LANE * itemsize)
    block_rows = max(ROW_ALIGN, (block_rows // ROW_ALIGN) * ROW_ALIGN)

    # Cap the block so the grid has >= MIN_GRID_BLOCKS steps (balanced work
    # for v7x's two TensorCores; neutral on single-TC v5e/v6e).
    cap = pl.cdiv(rows, MIN_GRID_BLOCKS)
    cap = max(ROW_ALIGN, ((cap + ROW_ALIGN - 1) // ROW_ALIGN) * ROW_ALIGN)
    block_rows = min(block_rows, cap)

    grid = (pl.cdiv(rows, block_rows),)
    return pl.pallas_call(
        relu_kernel,
        out_shape=jax.ShapeDtypeStruct((rows, LANE), dtype),
        grid=grid,
        in_specs=[pl.BlockSpec((block_rows, LANE), lambda i: (i, 0))],
        out_specs=pl.BlockSpec((block_rows, LANE), lambda i: (i, 0)),
        compiler_params=pltpu.CompilerParams(
            dimension_semantics=("parallel",),
            vmem_limit_bytes=vmem_limit,
        ),
    )(x2d)


def pallas_relu(x):
    """ReLU over an arbitrary-shaped array via a flattened 2D Pallas kernel."""
    orig_shape = x.shape
    orig_dtype = x.dtype
    itemsize = jnp.dtype(orig_dtype).itemsize

    flat = x.reshape(-1)
    n = flat.shape[0]
    total_bytes = n * itemsize

    if n % LANE == 0:
        # Common case (NCHW conv maps, typical hidden sizes): free reshape,
        # no padding, no post-slice -> no extra HBM traffic.
        rows = n // LANE
        x2d = flat.reshape(rows, LANE)
        if total_bytes <= SINGLE_BLOCK_BYTES:
            out2d = _relu_single_block(x2d, orig_dtype)
        else:
            out2d = _relu_grid(x2d, orig_dtype, itemsize)
        return out2d.reshape(orig_shape)

    if total_bytes <= SINGLE_BLOCK_BYTES:
        # Small ragged input: single full-extent (1, n) block, still no pad
        # and no post-slice. Masked lane stores are fine at this size.
        x2d = flat.reshape(1, n)
        out2d = _relu_single_block(x2d, orig_dtype)
        return out2d.reshape(orig_shape)

    # Rare fallback: large AND not lane-aligned. Zero-padding is
    # ReLU-invariant; the pad + slice cost extra HBM traffic but keep the
    # kernel path simple and correct.
    pad = (-n) % LANE
    flat_p = jnp.pad(flat, (0, pad))
    rows = (n + pad) // LANE
    out2d = _relu_grid(flat_p.reshape(rows, LANE), orig_dtype, itemsize)
    return out2d.reshape(-1)[:n].reshape(orig_shape)


if __name__ == "__main__":
    key = jax.random.PRNGKey(0)
    # NCHW input consistent with typical nn.ReLU usage on conv feature maps.
    x = jax.random.normal(key, (2, 4, 16, 16), dtype=jnp.float32)

    y = pallas_relu(x)
    jax.block_until_ready(y)

    # Sanity check against pure-JAX reference.
    ref = jnp.maximum(x, 0.0)
    assert y.shape == x.shape and y.dtype == x.dtype
    assert jnp.allclose(y, ref), "mismatch vs reference ReLU"

    print("KERNEL_OK")
</pallas_src>

<mosaic_0001>
module attributes {stable_mosaic.version = 11 : i64} {
  func.func @relu_kernel(%arg0: memref<16x128xf32, #tpu.memory_space<vmem>>, %arg1: memref<16x128xf32, #tpu.memory_space<vmem>>) attributes {dimension_semantics = [], scalar_prefetch = 0 : i64, scratch_operands = 0 : i64, tpu.core_type = #tpu.core_type<tc>} {
    %c0 = arith.constant 0 : index
    %c0_0 = arith.constant 0 : index
    %0 = vector.load %arg0[%c0, %c0_0] : memref<16x128xf32, #tpu.memory_space<vmem>>, vector<16x128xf32>
    %cst = arith.constant 0.000000e+00 : f32
    %1 = vector.broadcast %cst : f32 to vector<16x128xf32>
    %2 = arith.maximumf %0, %1 : vector<16x128xf32>
    %c0_1 = arith.constant 0 : index
    %c0_2 = arith.constant 0 : index
    %3 = vector.load %arg1[%c0_1, %c0_2] : memref<16x128xf32, #tpu.memory_space<vmem>>, vector<16x128xf32>
    tpu.vector_store %arg1[%c0_1, %c0_2], %2 {strides = array<i32>} : memref<16x128xf32, #tpu.memory_space<vmem>>, vector<16x128xf32>,
    return
  }
}

</mosaic_0001>

<llo_original>
// kernel: tpu_custom_call.1
$region0: #{tpu_custom_call.1}
  #allocation0 [shape = 'u32[]', space=smem, size = 0x4, offset = 0x4, fixed_abs, tag = 'smem constant byte address 0x4 - core index']
  #allocation1 [shape = 'u32[144,128]{1,0:T(1,128)}', space=vmem, size = 0x12000, scoped, tag = 'internal scratch']
  %s0 = inlined_call_operand.hbm [shape: f32[16,128], index: 0, kind: input, shape index: {}]
  %s1 = inlined_call_operand.hbm [shape: f32[16,128], index: 1, kind: output, shape index: {}]
  %s2 = sld [smem:[#allocation0]]
  $region18: #{tpu_custom_call.1} parent=0
    _
  %s4 = ssub.s32 1, %s2
  %s5 = scalar_select 0, %s4, %s2
  $region1: #{tpu_custom_call.1} parent=0
    #allocation2 [shape = 'u8[8192]{0}', space=vmem, size = 0x2000, scoped, tag = 'input window, operand 0, single buffered']
    #allocation3 [shape = 's32[1]{0}', space=sflag, size = 0x4, scoped, tag = 'scoped memory for tpu_custom_call.1']
    #allocation4 [shape = 's32[1]{0}', space=sflag, size = 0x4, scoped, tag = 'scoped memory for tpu_custom_call.1']
    #allocation5 [shape = 'u8[8192]{0}', space=vmem, size = 0x2000, scoped, tag = 'output window, operand 0, single buffered']
    %6 = vsyncpa [#allocation3], 0
    %7 = vsyncpa [#allocation4], 0
    // Predicated region
    $region2: #{tpu_custom_call.1} parent=1 // pred_check
      _
    $region3: #{tpu_custom_call.1} parent=1 // pred_check_branch
      %9 = sbr.rel (0) target = $region5
    $region4: #{tpu_custom_call.1} parent=1 // pred_region
      %s11 = ssub.s32 256, 256
      %12 = vsyncadd [#allocation3], %s11
      %s13 = sshll.u32 [#allocation2], 4
      %s14 = int_to_ptr.vmem [resolvable:$true] %s13
      %19 = dma.hbm_to_vmem [thread:$0]  %s0, 256, %s14, [#allocation3], 128, 128, 8
    $region5: #{tpu_custom_call.1} parent=1 // pred_fallthru
      _
    // Predicated region
    $region6: #{tpu_custom_call.1} parent=1 // pred_check
      _
    $region7: #{tpu_custom_call.1} parent=1 // pred_check_branch
      %21 = sbr.rel (0) target = $region9
    $region8: #{tpu_custom_call.1} parent=1 // pred_region
      %22 = dma.done [#allocation3], 256
    $region9: #{tpu_custom_call.1} parent=1 // pred_fallthru
      _
    %v23 = vld [vmem:[#allocation2] sm:$0xff]
    %v24 = vld [vmem:[#allocation2 + $0x8] sm:$0xff]
    %v25 = vmax.f32 %v23, 0.0
    %v26 = vmax.f32 %v24, 0.0
    %27 = vst [vmem:[#allocation5] sm:$0xff] %v25
    %28 = vst [vmem:[#allocation5 + $0x8] sm:$0xff] %v26
    // Predicated region
    $region10: #{tpu_custom_call.1} parent=1 // pred_check
      _
    $region11: #{tpu_custom_call.1} parent=1 // pred_check_branch
      %30 = sbr.rel (0) target = $region13
    $region12: #{tpu_custom_call.1} parent=1 // pred_region
      %s32 = ssub.s32 256, 256
      %33 = vsyncadd [#allocation4], %s32
      %s34 = sshll.u32 [#allocation5], 4
      %s35 = int_to_ptr.vmem [resolvable:$true] %s34
      %40 = dma.vmem_to_hbm [thread:$0]  %s35, 256, %s1, [#allocation4], 128, 128, 8
    $region13: #{tpu_custom_call.1} parent=1 // pred_fallthru
      _
    // Predicated region
    $region14: #{tpu_custom_call.1} parent=1 // pred_check
      _
    $region15: #{tpu_custom_call.1} parent=1 // pred_check_branch
      %42 = sbr.rel (0) target = $region17
    $region16: #{tpu_custom_call.1} parent=1 // pred_region
      %43 = dma.done [#allocation4], 256
    $region17: #{tpu_custom_call.1} parent=1 // pred_fallthru
      _
    %44 = vsyncpa [#allocation3], 1
    %45 = vsyncpa [#allocation4], 1

</llo_original>
